<compile_context>
chip_gen: v5e
topology: v5e:2x2
jax: 0.10.0
libtpu: 0.0.40
codegen_flags: <defaults>
</compile_context>

<pallas_src>
import jax
import jax.numpy as jnp
from jax.experimental import pallas as pl
from jax.experimental.pallas import tpu as pltpu


# Finite "minus infinity": loses every max() against a real logit but keeps exp()/0*x
# paths NaN-free (unlike -inf).
_NEG_LARGE = -1e30

# Pass-1 edge stream is split into this many independent halves (leading "parallel"
# grid axis) so v7x's two TensorCores can each reduce one half; harmless on 1-TC chips.
_CORE_SPLITS = 2


# --------------------------------------------------------------------------------------
# Pass 1: per-(head, node) segment max / sum, accumulated online across edge tiles.
# Accumulators are lane-dense (H, N); alpha is streamed out for pass 2.
# --------------------------------------------------------------------------------------
def _segment_stats_kernel(target_ref, message_ref, xprojt_ref, wmsg_ref,
                          alpha_ref, segmax_ref, segsum_ref):
    i = pl.program_id(1)                       # position along the (arbitrary) edge axis
    tE = message_ref.shape[0]
    H, N = segmax_ref.shape

    @pl.when(i == 0)
    def _init():
        segmax_ref[...] = jnp.full((H, N), _NEG_LARGE, jnp.float32)
        segsum_ref[...] = jnp.zeros((H, N), jnp.float32)

    t = target_ref[...]                                                  # (tE, 1) int32
    node_ids = jax.lax.broadcasted_iota(jnp.int32, (tE, N), 1)           # (tE, N)
    tgt_mask = t == node_ids                                             # (tE, N) bool
    onehot = tgt_mask.astype(jnp.float32)                                # exact {0, 1}
    # Padded edges carry target == N: all-zero row -> they contribute nothing below.

    # logits[e, h] = <message_[e, h, :], W[h, :d]> + xproj[target[e], h]  (pre-gathered)
    logits = (jnp.dot(message_ref[...], wmsg_ref[...],
                      preferred_element_type=jnp.float32)
              + xprojt_ref[...])
    alpha = jnp.where(logits >= 0, logits, 0.1 * logits)                 # LeakyReLU(0.1)
    alpha_ref[...] = alpha                                               # carried to pass 2

    # Exact per-(head, node) max of this tile, built lane-dense: unrolled loop over the
    # small static head count, one (tE, N) mask alive at a time, no (tE, N, H) temps.
    rows = []
    for h in range(H):
        masked_h = jnp.where(tgt_mask, alpha[:, h:h + 1], _NEG_LARGE)    # (tE, N)
        rows.append(jnp.max(masked_h, axis=0, keepdims=True))            # (1, N)
    tile_max = jnp.concatenate(rows, axis=0)                             # (H, N)

    # Online (flash-softmax style) update of the running segment statistics.
    run_max = segmax_ref[...]                                            # (H, N)
    new_max = jnp.maximum(run_max, tile_max)
    corr = jnp.exp(run_max - new_max)          # 0 for freshly seen nodes, 1 if unchanged

    # edge_max[e, h] = new_max[h, target[e]]  (rhs-transposed dot -> no explicit .T)
    edge_max = jax.lax.dot_general(onehot, new_max, (((1,), (1,)), ((), ())),
                                   preferred_element_type=jnp.float32)   # (tE, H)
    exp_vals = jnp.exp(alpha - edge_max)                                 # (tE, H)
    # tile_sum[h, n] = sum_e exp_vals[e, h] * onehot[e, n]; only the tiny (tE, H)
    # operand is transposed (the old version transposed the big (tE, N) one-hot).
    tile_sum = jnp.dot(exp_vals.T, onehot, preferred_element_type=jnp.float32)  # (H, N)

    segsum_ref[...] = corr * segsum_ref[...] + tile_sum
    segmax_ref[...] = new_max


# --------------------------------------------------------------------------------------
# Pass 2: normalize per edge and scale the message (independent edge tiles).
# Everything per-target was pre-gathered in XLA; no one-hot, no (tE, N) work here.
# --------------------------------------------------------------------------------------
def _normalize_scale_kernel(message_ref, alpha_ref, emax_ref, esum_ref, expand_ref,
                            out_ref):
    exp_vals = jnp.exp(alpha_ref[...] - emax_ref[...])                  # (tE, H)
    denom = jnp.maximum(esum_ref[...], 1e-16)
    # EUP reciprocal (keeps the divide off the VALU) + 2 Newton steps -> f32 accuracy.
    inv = pl.reciprocal(denom, approx=True)
    inv = inv * (2.0 - denom * inv)
    inv = inv * (2.0 - denom * inv)
    alpha_sm = exp_vals * inv                                            # (tE, H)

    # TODO(synk): nn.Dropout(p=0.1) is identity in eval mode; training-mode dropout
    # (pltpu.prng_* + stochastic mask on alpha_sm) is not applied here.

    # Broadcast each head's weight over its d features and scale the message.
    alpha_full = jnp.dot(alpha_sm, expand_ref[...], preferred_element_type=jnp.float32)
    out_ref[...] = message_ref[...] * alpha_full


# --------------------------------------------------------------------------------------
# Wrapper: parameter glue, generation-aware tiling / VMEM budgeting, two pallas_calls.
# --------------------------------------------------------------------------------------
def _round_up(x, m):
    return ((x + m - 1) // m) * m


def _vmem_capacity_bytes():
    try:
        return int(pltpu.get_tpu_info().vmem_capacity_bytes)
    except Exception:
        return 64 * 1024 * 1024          # conservative (v7x-sized) default


def _pass1_vmem_bytes(te, n, d, h):
    """(8,128)-padding-aware per-call VMEM estimate for pass 1 (the bigger pass)."""
    f32 = 4
    n_p = _round_up(n, 128)
    d_p = _round_up(d, 128)
    h_p = _round_up(h, 128)
    # double-buffered streamed blocks: target (int32 col), message, xproj_t, alpha(out)
    streamed = 2 * te * (128 + d_p + 2 * h_p) * f32
    # resident: w_msg_bd + 2 (H, N) accumulators (count x2 buffers to be safe)
    resident = 2 * (_round_up(d, 8) * h_p + 2 * _round_up(h, 8) * n_p) * f32
    # in-kernel temps: mask/one-hot/masked rows ~3 x (te, n) + small (te, *) stuff
    temps = (3 * te * n_p + 8 * te * h_p + te * d_p) * f32
    return streamed + resident + temps


def _choose_tile_e(E, N, D, H, budget_bytes):
    """Largest edge tile (multiple of 8, <= 2048) that fits the VMEM budget."""
    e8 = _round_up(max(E, 1), 8)
    for cand in (2048, 1536, 1024, 768, 512, 384, 256, 128, 64, 32, 16, 8):
        te = min(_round_up(min(cand, e8), 8), e8)
        if _pass1_vmem_bytes(te, N, D, H) <= budget_bytes:
            return te
    return 8


def attention_edge_weighting(target, message, x_e, weight, num_heads, tile_e=None):
    """Pallas forward of AttentionEdgeWeighting (eval mode).

    target: (E,) int, message: (E, D) f32, x_e: (N, D) f32,
    weight: (H, 2*D//H) f32 (the torch nn.Parameter), num_heads = H.
    """
    message = message.astype(jnp.float32)
    x_e = x_e.astype(jnp.float32)
    weight = weight.astype(jnp.float32)

    E, D = message.shape
    N = x_e.shape[0]
    H = num_heads
    if D % H != 0:
        raise ValueError(f"message_dim={D} must be divisible by num_heads={H}")
    d = D // H

    # ---- parameter glue (tiny XLA): block-diagonal msg projection + expand matrix ----
    w_msg = weight[:, :d]                          # (H, d)  message half of W
    w_xe = weight[:, d:]                           # (H, d)  x_e half of W
    head_of_k = jnp.arange(D) // d                 # (D,)
    blk = (head_of_k[:, None] == jnp.arange(H)[None, :]).astype(jnp.float32)   # (D, H)
    w_msg_bd = blk * w_msg.reshape(D)[:, None]     # (D, H): msg @ w_msg_bd == einsum('ihd,hd->ih')
    expand = blk.T                                 # (H, D): head h -> its d feature cols

    # Per-node projection against the x_e half of W (computed once, outside the kernel).
    xproj = jnp.einsum("nhj,hj->nh", x_e.reshape(N, H, d), w_xe,
                       precision=jax.lax.Precision.HIGHEST)              # (N, H)

    # ---- generation-aware VMEM budget & edge tiling ----
    vmem_cap = _vmem_capacity_bytes()                       # 64 MiB v7x / 128 MiB v5e,v6e
    vmem_limit = max(32 * 1024 * 1024,
                     min(vmem_cap * 3 // 4, vmem_cap - 16 * 1024 * 1024))
    if tile_e is None:
        tile_e = _choose_tile_e(E, N, D, H, budget_bytes=int(vmem_limit * 0.85))
    tile_e = max(8, min(_round_up(tile_e, 8), _round_up(E, 8)))

    # Pad E so the edge stream splits evenly into _CORE_SPLITS halves of whole tiles.
    E_pad = _round_up(E, _CORE_SPLITS * tile_e)
    n_tiles = E_pad // tile_e
    n_half = n_tiles // _CORE_SPLITS

    # Padded edges use target == N: they match no node in pass 1.
    tpad = jnp.pad(target.astype(jnp.int32), (0, E_pad - E), constant_values=N)
    tclip = jnp.minimum(tpad, N - 1)                 # in-bounds indices for gathers
    tcol = tpad.reshape(E_pad, 1)
    mpad = jnp.pad(message, ((0, E_pad - E), (0, 0)))
    xproj_t = jnp.take(xproj, tclip, axis=0)         # (E_pad, H) pre-gathered xproj

    edge_map = lambda c, i: (c * n_half + i, 0)
    const_map = lambda c, i: (0, 0)
    core_map = lambda c, i: (c, 0)

    # ---- pass 1: per-half (H, N) segment max / sum + streamed alpha ----
    alpha, seg_max_p, seg_sum_p = pl.pallas_call(
        _segment_stats_kernel,
        out_shape=(
            jax.ShapeDtypeStruct((E_pad, H), jnp.float32),               # alpha (streamed)
            jax.ShapeDtypeStruct((_CORE_SPLITS * H, N), jnp.float32),    # seg_max halves
            jax.ShapeDtypeStruct((_CORE_SPLITS * H, N), jnp.float32),    # seg_sum halves
        ),
        grid_spec=pltpu.PrefetchScalarGridSpec(
            num_scalar_prefetch=0,
            grid=(_CORE_SPLITS, n_half),
            in_specs=[
                pl.BlockSpec((tile_e, 1), edge_map),     # target tile
                pl.BlockSpec((tile_e, D), edge_map),     # message tile
                pl.BlockSpec((tile_e, H), edge_map),     # xproj[target] tile
                pl.BlockSpec((D, H), const_map),         # w_msg_bd (resident)
            ],
            out_specs=(
                pl.BlockSpec((tile_e, H), edge_map),     # alpha (streamed)
                pl.BlockSpec((H, N), core_map),          # per-half resident accumulators
                pl.BlockSpec((H, N), core_map),
            ),
        ),
        compiler_params=pltpu.CompilerParams(
            dimension_semantics=("parallel", "arbitrary"),
            vmem_limit_bytes=int(vmem_limit),
        ),
    )(tcol, mpad, xproj_t, w_msg_bd)

    # ---- combine the per-half partial statistics (tiny XLA elementwise) ----
    seg_max_p = seg_max_p.reshape(_CORE_SPLITS, H, N)
    seg_sum_p = seg_sum_p.reshape(_CORE_SPLITS, H, N)
    seg_max = jnp.max(seg_max_p, axis=0)                                 # (H, N)
    seg_sum = jnp.sum(jnp.exp(seg_max_p - seg_max[None]) * seg_sum_p, axis=0)

    # ---- pre-gather the per-target statistics per edge (tiny XLA gather) ----
    emax_t = jnp.take(seg_max, tclip, axis=1).T                          # (E_pad, H)
    esum_t = jnp.take(seg_sum, tclip, axis=1).T                          # (E_pad, H)

    # ---- pass 2: normalize + scale (independent edge tiles -> megacore parallel) ----
    out = pl.pallas_call(
        _normalize_scale_kernel,
        out_shape=jax.ShapeDtypeStruct((E_pad, D), jnp.float32),
        grid_spec=pltpu.PrefetchScalarGridSpec(
            num_scalar_prefetch=0,
            grid=(n_tiles,),
            in_specs=[
                pl.BlockSpec((tile_e, D), lambda i: (i, 0)),   # message tile
                pl.BlockSpec((tile_e, H), lambda i: (i, 0)),   # alpha tile (from pass 1)
                pl.BlockSpec((tile_e, H), lambda i: (i, 0)),   # seg_max[target] tile
                pl.BlockSpec((tile_e, H), lambda i: (i, 0)),   # seg_sum[target] tile
                pl.BlockSpec((H, D), lambda i: (0, 0)),        # expand (resident)
            ],
            out_specs=pl.BlockSpec((tile_e, D), lambda i: (i, 0)),
        ),
        compiler_params=pltpu.CompilerParams(
            dimension_semantics=("parallel",),
            vmem_limit_bytes=int(vmem_limit),
        ),
    )(mpad, alpha, emax_t, esum_t, expand)

    return out[:E]


# --------------------------------------------------------------------------------------
# Pure-JAX reference mirroring the torch module (eval mode).
# --------------------------------------------------------------------------------------
def _reference(target, message, x_e, weight, num_heads):
    E, D = message.shape
    N = x_e.shape[0]
    H = num_heads
    d = D // H
    message_ = message.reshape(E, H, d)
    xe_t = x_e[target].reshape(E, H, d)
    cat = jnp.concatenate([message_, xe_t], axis=-1)          # (E, H, 2d)
    logits = jnp.einsum("ihd,hd->ih", cat, weight)            # (E, H)
    alpha = jnp.where(logits >= 0, logits, 0.1 * logits)
    seg_max = jax.ops.segment_max(alpha, target, num_segments=N)      # (N, H)
    seg_max = jnp.where(jnp.isfinite(seg_max), seg_max, 0.0)
    shifted = jnp.exp(alpha - seg_max[target])
    seg_sum = jax.ops.segment_sum(shifted, target, num_segments=N)    # (N, H)
    alpha_sm = shifted / jnp.maximum(seg_sum[target], 1e-16)
    return (message_ * alpha_sm[:, :, None]).reshape(E, H * d)


if __name__ == "__main__":
    key = jax.random.PRNGKey(0)
    k_t, k_m, k_x, k_w = jax.random.split(key, 4)

    num_edges = 16
    num_nodes = 8
    message_dim = 32
    num_heads = 8
    attn_dim = message_dim // num_heads  # 4

    target = jax.random.randint(k_t, (num_edges,), 0, num_nodes, dtype=jnp.int32)
    message = jax.random.normal(k_m, (num_edges, message_dim), dtype=jnp.float32)
    x_e = jax.random.normal(k_x, (num_nodes, message_dim), dtype=jnp.float32)

    # xavier_uniform_ on (num_heads, 2 * attn_dim): bound = sqrt(6 / (fan_in + fan_out))
    fan_out, fan_in = num_heads, 2 * attn_dim
    bound = (6.0 / (fan_in + fan_out)) ** 0.5
    weight = jax.random.uniform(
        k_w, (num_heads, 2 * attn_dim), minval=-bound, maxval=bound, dtype=jnp.float32
    )

    # tile_e=8 -> 2 edge tiles (one per core split): exercises both the cross-tile
    # online segment reduction and the per-half combine.
    out = attention_edge_weighting(target, message, x_e, weight, num_heads, tile_e=8)
    out = jax.block_until_ready(out)

    ref = _reference(target, message, x_e, weight, num_heads)
    assert out.shape == (num_edges, message_dim)
    assert jnp.allclose(out, ref, atol=2e-4, rtol=2e-4), "mismatch vs reference"

    print("KERNEL_OK")
</pallas_src>

<mosaic_0001>
module attributes {stable_mosaic.version = 11 : i64} {
  func.func @_segment_stats_kernel(%arg0: i32, %arg1: i32, %arg2: memref<8x1xi32, #tpu.memory_space<vmem>>, %arg3: memref<8x32xf32, #tpu.memory_space<vmem>>, %arg4: memref<8x8xf32, #tpu.memory_space<vmem>>, %arg5: memref<32x8xf32, #tpu.memory_space<vmem>>, %arg6: memref<8x8xf32, #tpu.memory_space<vmem>>, %arg7: memref<8x8xf32, #tpu.memory_space<vmem>>, %arg8: memref<8x8xf32, #tpu.memory_space<vmem>>) attributes {dimension_semantics = [#tpu.dimension_semantics<parallel>, #tpu.dimension_semantics<arbitrary>], iteration_bounds = array<i64: 2, 1>, scalar_prefetch = 0 : i64, scratch_operands = 0 : i64, tpu.core_type = #tpu.core_type<tc>, window_params = [{transform_indices = @transform_0, window_bounds = array<i64: 8, 1>}, {transform_indices = @transform_1, window_bounds = array<i64: 8, 32>}, {transform_indices = @transform_2, window_bounds = array<i64: 8, 8>}, {pipeline_mode = #tpu.pipeline_mode<synchronous>, transform_indices = @transform_3, window_bounds = array<i64: 32, 8>}, {transform_indices = @transform_4, window_bounds = array<i64: 8, 8>}, {transform_indices = @transform_5, window_bounds = array<i64: 8, 8>}, {transform_indices = @transform_6, window_bounds = array<i64: 8, 8>}]} {
    %c0_i32 = arith.constant 0 : i32
    %0 = arith.cmpi eq, %arg1, %c0_i32 : i32
    %1 = arith.extui %0 : i1 to i32
    %c0_i32_0 = arith.constant 0 : i32
    %2 = arith.cmpi ne, %1, %c0_i32_0 : i32
    scf.if %2 {
      %cst_38 = arith.constant -1.000000e+30 : f32
      %91 = vector.broadcast %cst_38 : f32 to vector<8x8xf32>
      %c0_39 = arith.constant 0 : index
      %c0_40 = arith.constant 0 : index
      %92 = vector.load %arg7[%c0_39, %c0_40] : memref<8x8xf32, #tpu.memory_space<vmem>>, vector<8x8xf32>
      tpu.vector_store %arg7[%c0_39, %c0_40], %91 {strides = array<i32>} : memref<8x8xf32, #tpu.memory_space<vmem>>, vector<8x8xf32>,
      %cst_41 = arith.constant 0.000000e+00 : f32
      %93 = vector.broadcast %cst_41 : f32 to vector<8x8xf32>
      %c0_42 = arith.constant 0 : index
      %c0_43 = arith.constant 0 : index
      %94 = vector.load %arg8[%c0_42, %c0_43] : memref<8x8xf32, #tpu.memory_space<vmem>>, vector<8x8xf32>
      tpu.vector_store %arg8[%c0_42, %c0_43], %93 {strides = array<i32>} : memref<8x8xf32, #tpu.memory_space<vmem>>, vector<8x8xf32>,
    } else {
    }
    %c0 = arith.constant 0 : index
    %c0_1 = arith.constant 0 : index
    %3 = vector.load %arg2[%c0, %c0_1] : memref<8x1xi32, #tpu.memory_space<vmem>>, vector<8x1xi32>
    %4 = tpu.iota {dimensions = array<i32: 1>} : vector<8x8xi32>
    %5 = vector.broadcast %3 : vector<8x1xi32> to vector<8x8xi32>
    %6 = arith.cmpi eq, %5, %4 : vector<8x8xi32>
    %7 = arith.extui %6 : vector<8x8xi1> to vector<8x8xi32>
    %8 = arith.sitofp %7 : vector<8x8xi32> to vector<8x8xf32>
    %c0_2 = arith.constant 0 : index
    %c0_3 = arith.constant 0 : index
    %9 = vector.load %arg3[%c0_2, %c0_3] : memref<8x32xf32, #tpu.memory_space<vmem>>, vector<8x32xf32>
    %c0_4 = arith.constant 0 : index
    %c0_5 = arith.constant 0 : index
    %10 = vector.load %arg5[%c0_4, %c0_5] : memref<32x8xf32, #tpu.memory_space<vmem>>, vector<32x8xf32>
    %cst = arith.constant dense<0.000000e+00> : vector<8x8xf32>
    %11 = tpu.matmul %9, %10, %cst {dimension_numbers = #tpu.dot_dimension_numbers<[1], [0], [0], [1], [0, 0, 1, 1], [], []>} : vector<8x32xf32>, vector<32x8xf32>, vector<8x8xf32> -> vector<8x8xf32>
    %c0_6 = arith.constant 0 : index
    %c0_7 = arith.constant 0 : index
    %12 = vector.load %arg4[%c0_6, %c0_7] : memref<8x8xf32, #tpu.memory_space<vmem>>, vector<8x8xf32>
    %13 = arith.addf %11, %12 : vector<8x8xf32>
    %cst_8 = arith.constant 0.000000e+00 : f32
    %14 = vector.broadcast %cst_8 : f32 to vector<8x8xf32>
    %15 = arith.cmpf oge, %13, %14 : vector<8x8xf32>
    %cst_9 = arith.constant 1.000000e-01 : f32
    %16 = vector.broadcast %cst_9 : f32 to vector<8x8xf32>
    %17 = arith.mulf %16, %13 : vector<8x8xf32>
    %18 = arith.select %15, %13, %17 : vector<8x8xi1>, vector<8x8xf32>
    %c0_10 = arith.constant 0 : index
    %c0_11 = arith.constant 0 : index
    %19 = vector.load %arg6[%c0_10, %c0_11] : memref<8x8xf32, #tpu.memory_space<vmem>>, vector<8x8xf32>
    tpu.vector_store %arg6[%c0_10, %c0_11], %18 {strides = array<i32>} : memref<8x8xf32, #tpu.memory_space<vmem>>, vector<8x8xf32>,
    %20 = vector.extract_strided_slice %18 {offsets = [0, 0], sizes = [8, 1], strides = [1, 1]} : vector<8x8xf32> to vector<8x1xf32>
    %cst_12 = arith.constant -1.000000e+30 : f32
    %21 = vector.shape_cast %20 : vector<8x1xf32> to vector<8x1xf32>
    %22 = vector.broadcast %21 : vector<8x1xf32> to vector<8x8xf32>
    %23 = vector.broadcast %cst_12 : f32 to vector<8x8xf32>
    %24 = arith.select %6, %22, %23 : vector<8x8xi1>, vector<8x8xf32>
    %cst_13 = arith.constant dense<0xFF800000> : vector<8xf32>
    %25 = vector.multi_reduction <maximumf>, %24, %cst_13 [0] : vector<8x8xf32> to vector<8xf32>
    %26 = vector.shape_cast %25 : vector<8xf32> to vector<1x8xf32>
    %27 = vector.extract_strided_slice %18 {offsets = [0, 1], sizes = [8, 1], strides = [1, 1]} : vector<8x8xf32> to vector<8x1xf32>
    %cst_14 = arith.constant -1.000000e+30 : f32
    %28 = vector.shape_cast %27 : vector<8x1xf32> to vector<8x1xf32>
    %29 = vector.broadcast %28 : vector<8x1xf32> to vector<8x8xf32>
    %30 = vector.broadcast %cst_14 : f32 to vector<8x8xf32>
    %31 = arith.select %6, %29, %30 : vector<8x8xi1>, vector<8x8xf32>
    %cst_15 = arith.constant dense<0xFF800000> : vector<8xf32>
    %32 = vector.multi_reduction <maximumf>, %31, %cst_15 [0] : vector<8x8xf32> to vector<8xf32>
    %33 = vector.shape_cast %32 : vector<8xf32> to vector<1x8xf32>
    %34 = vector.extract_strided_slice %18 {offsets = [0, 2], sizes = [8, 1], strides = [1, 1]} : vector<8x8xf32> to vector<8x1xf32>
    %cst_16 = arith.constant -1.000000e+30 : f32
    %35 = vector.shape_cast %34 : vector<8x1xf32> to vector<8x1xf32>
    %36 = vector.broadcast %35 : vector<8x1xf32> to vector<8x8xf32>
    %37 = vector.broadcast %cst_16 : f32 to vector<8x8xf32>
    %38 = arith.select %6, %36, %37 : vector<8x8xi1>, vector<8x8xf32>
    %cst_17 = arith.constant dense<0xFF800000> : vector<8xf32>
    %39 = vector.multi_reduction <maximumf>, %38, %cst_17 [0] : vector<8x8xf32> to vector<8xf32>
    %40 = vector.shape_cast %39 : vector<8xf32> to vector<1x8xf32>
    %41 = vector.extract_strided_slice %18 {offsets = [0, 3], sizes = [8, 1], strides = [1, 1]} : vector<8x8xf32> to vector<8x1xf32>
    %cst_18 = arith.constant -1.000000e+30 : f32
    %42 = vector.shape_cast %41 : vector<8x1xf32> to vector<8x1xf32>
    %43 = vector.broadcast %42 : vector<8x1xf32> to vector<8x8xf32>
    %44 = vector.broadcast %cst_18 : f32 to vector<8x8xf32>
    %45 = arith.select %6, %43, %44 : vector<8x8xi1>, vector<8x8xf32>
    %cst_19 = arith.constant dense<0xFF800000> : vector<8xf32>
    %46 = vector.multi_reduction <maximumf>, %45, %cst_19 [0] : vector<8x8xf32> to vector<8xf32>
    %47 = vector.shape_cast %46 : vector<8xf32> to vector<1x8xf32>
    %48 = vector.extract_strided_slice %18 {offsets = [0, 4], sizes = [8, 1], strides = [1, 1]} : vector<8x8xf32> to vector<8x1xf32>
    %cst_20 = arith.constant -1.000000e+30 : f32
    %49 = vector.shape_cast %48 : vector<8x1xf32> to vector<8x1xf32>
    %50 = vector.broadcast %49 : vector<8x1xf32> to vector<8x8xf32>
    %51 = vector.broadcast %cst_20 : f32 to vector<8x8xf32>
    %52 = arith.select %6, %50, %51 : vector<8x8xi1>, vector<8x8xf32>
    %cst_21 = arith.constant dense<0xFF800000> : vector<8xf32>
    %53 = vector.multi_reduction <maximumf>, %52, %cst_21 [0] : vector<8x8xf32> to vector<8xf32>
    %54 = vector.shape_cast %53 : vector<8xf32> to vector<1x8xf32>
    %55 = vector.extract_strided_slice %18 {offsets = [0, 5], sizes = [8, 1], strides = [1, 1]} : vector<8x8xf32> to vector<8x1xf32>
    %cst_22 = arith.constant -1.000000e+30 : f32
    %56 = vector.shape_cast %55 : vector<8x1xf32> to vector<8x1xf32>
    %57 = vector.broadcast %56 : vector<8x1xf32> to vector<8x8xf32>
    %58 = vector.broadcast %cst_22 : f32 to vector<8x8xf32>
    %59 = arith.select %6, %57, %58 : vector<8x8xi1>, vector<8x8xf32>
    %cst_23 = arith.constant dense<0xFF800000> : vector<8xf32>
    %60 = vector.multi_reduction <maximumf>, %59, %cst_23 [0] : vector<8x8xf32> to vector<8xf32>
    %61 = vector.shape_cast %60 : vector<8xf32> to vector<1x8xf32>
    %62 = vector.extract_strided_slice %18 {offsets = [0, 6], sizes = [8, 1], strides = [1, 1]} : vector<8x8xf32> to vector<8x1xf32>
    %cst_24 = arith.constant -1.000000e+30 : f32
    %63 = vector.shape_cast %62 : vector<8x1xf32> to vector<8x1xf32>
    %64 = vector.broadcast %63 : vector<8x1xf32> to vector<8x8xf32>
    %65 = vector.broadcast %cst_24 : f32 to vector<8x8xf32>
    %66 = arith.select %6, %64, %65 : vector<8x8xi1>, vector<8x8xf32>
    %cst_25 = arith.constant dense<0xFF800000> : vector<8xf32>
    %67 = vector.multi_reduction <maximumf>, %66, %cst_25 [0] : vector<8x8xf32> to vector<8xf32>
    %68 = vector.shape_cast %67 : vector<8xf32> to vector<1x8xf32>
    %69 = vector.extract_strided_slice %18 {offsets = [0, 7], sizes = [8, 1], strides = [1, 1]} : vector<8x8xf32> to vector<8x1xf32>
    %cst_26 = arith.constant -1.000000e+30 : f32
    %70 = vector.shape_cast %69 : vector<8x1xf32> to vector<8x1xf32>
    %71 = vector.broadcast %70 : vector<8x1xf32> to vector<8x8xf32>
    %72 = vector.broadcast %cst_26 : f32 to vector<8x8xf32>
    %73 = arith.select %6, %71, %72 : vector<8x8xi1>, vector<8x8xf32>
    %cst_27 = arith.constant dense<0xFF800000> : vector<8xf32>
    %74 = vector.multi_reduction <maximumf>, %73, %cst_27 [0] : vector<8x8xf32> to vector<8xf32>
    %75 = vector.shape_cast %74 : vector<8xf32> to vector<1x8xf32>
    %76 = tpu.concatenate %26, %33, %40, %47, %54, %61, %68, %75 in 0 : vector<1x8xf32>, vector<1x8xf32>, vector<1x8xf32>, vector<1x8xf32>, vector<1x8xf32>, vector<1x8xf32>, vector<1x8xf32>, vector<1x8xf32> -> vector<8x8xf32>
    %c0_28 = arith.constant 0 : index
    %c0_29 = arith.constant 0 : index
    %77 = vector.load %arg7[%c0_28, %c0_29] : memref<8x8xf32, #tpu.memory_space<vmem>>, vector<8x8xf32>
    %78 = arith.maximumf %77, %76 : vector<8x8xf32>
    %79 = arith.subf %77, %78 : vector<8x8xf32>
    %80 = math.exp %79 : vector<8x8xf32>
    %cst_30 = arith.constant dense<0.000000e+00> : vector<8x8xf32>
    %81 = tpu.matmul %8, %78, %cst_30 {dimension_numbers = #tpu.dot_dimension_numbers<[1], [1], [0], [0], [0, 0, 1, 0], [], []>} : vector<8x8xf32>, vector<8x8xf32>, vector<8x8xf32> -> vector<8x8xf32>
    %82 = arith.subf %18, %81 : vector<8x8xf32>
    %83 = math.exp %82 : vector<8x8xf32>
    %84 = tpu.transpose %83, [1, 0] : vector<8x8xf32> -> vector<8x8xf32>
    %cst_31 = arith.constant dense<0.000000e+00> : vector<8x8xf32>
    %85 = tpu.matmul %84, %8, %cst_31 {dimension_numbers = #tpu.dot_dimension_numbers<[1], [0], [0], [1], [0, 0, 1, 1], [], []>} : vector<8x8xf32>, vector<8x8xf32>, vector<8x8xf32> -> vector<8x8xf32>
    %c0_32 = arith.constant 0 : index
    %c0_33 = arith.constant 0 : index
    %86 = vector.load %arg8[%c0_32, %c0_33] : memref<8x8xf32, #tpu.memory_space<vmem>>, vector<8x8xf32>
    %87 = arith.mulf %80, %86 : vector<8x8xf32>
    %88 = arith.addf %87, %85 : vector<8x8xf32>
    %c0_34 = arith.constant 0 : index
    %c0_35 = arith.constant 0 : index
    %89 = vector.load %arg8[%c0_34, %c0_35] : memref<8x8xf32, #tpu.memory_space<vmem>>, vector<8x8xf32>
    tpu.vector_store %arg8[%c0_34, %c0_35], %88 {strides = array<i32>} : memref<8x8xf32, #tpu.memory_space<vmem>>, vector<8x8xf32>,
    %c0_36 = arith.constant 0 : index
    %c0_37 = arith.constant 0 : index
    %90 = vector.load %arg7[%c0_36, %c0_37] : memref<8x8xf32, #tpu.memory_space<vmem>>, vector<8x8xf32>
    tpu.vector_store %arg7[%c0_36, %c0_37], %78 {strides = array<i32>} : memref<8x8xf32, #tpu.memory_space<vmem>>, vector<8x8xf32>,
    return
  }
  func.func @transform_0(%arg0: i32, %arg1: i32) -> (i32, i32) {
    %c1_i32 = arith.constant 1 : i32
    %0 = arith.muli %arg0, %c1_i32 : i32
    %1 = arith.addi %0, %arg1 : i32
    %c0_i32 = arith.constant 0 : i32
    %c0_i32_0 = arith.constant 0 : i32
    return %1, %c0_i32 : i32, i32
  }
  func.func @transform_1(%arg0: i32, %arg1: i32) -> (i32, i32) {
    %c1_i32 = arith.constant 1 : i32
    %0 = arith.muli %arg0, %c1_i32 : i32
    %1 = arith.addi %0, %arg1 : i32
    %c0_i32 = arith.constant 0 : i32
    %c0_i32_0 = arith.constant 0 : i32
    return %1, %c0_i32 : i32, i32
  }
  func.func @transform_2(%arg0: i32, %arg1: i32) -> (i32, i32) {
    %c1_i32 = arith.constant 1 : i32
    %0 = arith.muli %arg0, %c1_i32 : i32
    %1 = arith.addi %0, %arg1 : i32
    %c0_i32 = arith.constant 0 : i32
    %c0_i32_0 = arith.constant 0 : i32
    return %1, %c0_i32 : i32, i32
  }
  func.func @transform_3(%arg0: i32, %arg1: i32) -> (i32, i32) {
    %c0_i32 = arith.constant 0 : i32
    %c0_i32_0 = arith.constant 0 : i32
    %c0_i32_1 = arith.constant 0 : i32
    return %c0_i32, %c0_i32_0 : i32, i32
  }
  func.func @transform_4(%arg0: i32, %arg1: i32) -> (i32, i32) {
    %c1_i32 = arith.constant 1 : i32
    %0 = arith.muli %arg0, %c1_i32 : i32
    %1 = arith.addi %0, %arg1 : i32
    %c0_i32 = arith.constant 0 : i32
    %c0_i32_0 = arith.constant 0 : i32
    return %1, %c0_i32 : i32, i32
  }
  func.func @transform_5(%arg0: i32, %arg1: i32) -> (i32, i32) {
    %c0_i32 = arith.constant 0 : i32
    %c0_i32_0 = arith.constant 0 : i32
    return %arg0, %c0_i32 : i32, i32
  }
  func.func @transform_6(%arg0: i32, %arg1: i32) -> (i32, i32) {
    %c0_i32 = arith.constant 0 : i32
    %c0_i32_0 = arith.constant 0 : i32
    return %arg0, %c0_i32 : i32, i32
  }
}

</mosaic_0001>

<llo_original>
// kernel: tpu_custom_call.1
$region0: #{tpu_custom_call.1}
  #allocation0 [shape = 'u32[]', space=smem, size = 0x4, offset = 0x4, fixed_abs, tag = 'smem constant byte address 0x4 - core index']
  #allocation1 [shape = 'u32[72,128]{1,0:T(1,128)}', space=vmem, size = 0x9000, scoped, tag = 'internal scratch']
  %s0 = inlined_call_operand.vmem [shape: s32[16,1], index: 0, kind: input, shape index: {}]
  %s1 = inlined_call_operand.vmem [shape: f32[16,32], index: 1, kind: input, shape index: {}]
  %s2 = inlined_call_operand.vmem [shape: f32[16,8], index: 2, kind: input, shape index: {}]
  %s3 = inlined_call_operand.vmem [shape: f32[32,8], index: 3, kind: input, shape index: {}]
  %s4 = inlined_call_operand.vmem [shape: f32[16,8], index: 4, kind: output, shape index: {0}]
  %s5 = inlined_call_operand.vmem [shape: f32[16,8], index: 5, kind: output, shape index: {1}]
  %s6 = inlined_call_operand.vmem [shape: f32[16,8], index: 6, kind: output, shape index: {2}]
  %7 = xla_tuple %s4, %s5, %s6
  %s8 = sld [smem:[#allocation0]]
  $region69: #{tpu_custom_call.1} parent=0
    _
  %s10 = ssub.s32 1, %s8
  %s11 = scalar_select 0, %s10, %s8
  loop: start=0, step=1, limit=4
  $region2: #{tpu_custom_call.1} parent=0 // loop_pre_header
    _
  $region3: #{tpu_custom_call.1} parent=0 // loop_header
    %s13 = sphi 0, %s17
    %p14 = scmp.ge.s32.totalorder %s13, 4
    %s20 = sphi 0, %s32
    %s21 = sphi 0, %s28
    %s22 = sphi 0, %s20
    %s23 = sphi 0, %s21
    %s24 = sphi 0, %s22
    %s25 = sphi 0, %s23
    %s37 = sphi 0, %s39
    %s40 = sphi 0, %s37
    %s41 = sphi 0, %s40
    %s57 = sphi 0, %s41
    %s65 = sphi 0, %s67
    %s68 = sphi 0, %s65
    %s69 = sphi 0, %s68
    %s85 = sphi 0, %s69
    %s93 = sphi 0, %s95
    %s96 = sphi 0, %s93
    %s97 = sphi 0, %s96
    %s113 = sphi 0, %s97
    %s117 = sphi 0, %s117
    %s119 = sphi 0, %s117
    %s120 = sphi 0, %s119
    %s134 = sphi 0, %s120
    %s142 = sphi 0, %s144
    %s145 = sphi 0, %s142
    %s146 = sphi 0, %s145
    %s162 = sphi 0, %s146
    %s168 = sphi 0, %s170
    %s171 = sphi 0, %s168
    %s172 = sphi 0, %s171
    %s188 = sphi 0, %s172
    %s194 = sphi 0, %s196
    %s197 = sphi 0, %s194
    %s198 = sphi 0, %s197
    %s214 = sphi 0, %s198
  $region4: #{tpu_custom_call.1} parent=0 // loop_header_branch
    %16 = sbr.rel (%p14) target = $region8
  $region5: #{tpu_custom_call.1} parent=0 // loop_body
    %s18 = ssub.s32 %s13, 1
    %s19 = ssub.s32 %s13, 2
    %s26 = sadd.s32 1, %s21
    %p27 = scmp.ge.s32.totalorder %s26, 1
    %s28 = scalar_select %p27, 0, %s26
    %s29 = sadd.s32 1, %s20
    %s30 = scalar_select %p27, %s29, %s20
    %p31 = scmp.ge.s32.totalorder %s30, 2
    %s32 = scalar_select %p31, 0, %s30
    %s33 = sadd.s32 %s20, %s21
    %s34 = sadd.s32 %s32, %s28
    %s35 = ssub.s32 %s33, %s34
    %p36 = scmp.eq.s32.totalorder %s35, 0
    %s38 = sadd.s32 %s37, 1
    %s39 = scalar_select %p36, %s37, %s38
    %p42 = pneg %p36
    %p43 = scmp.eq.s32.totalorder %s13, 1
    %p44 = por %p42, %p43
    %p45 = scmp.ne.s32.totalorder %s37, %s40
    %p46 = scmp.eq.s32.totalorder %s13, 0
    %p47 = por %p45, %p46
    %p48 = scmp.ne.s32.totalorder %s37, %s40
    %p49 = scmp.eq.s32.totalorder %s18, 1
    %p50 = por %p48, %p49
    %p51 = scmp.ne.s32.totalorder %s40, %s41
    %p52 = scmp.eq.s32.totalorder %s18, 0
    %p53 = por %p51, %p52
    %p54 = scmp.ne.s32.totalorder %s40, %s41
    %p55 = scmp.eq.s32.totalorder %s19, 1
    %p56 = por %p54, %p55
    %p58 = scmp.ne.s32.totalorder %s41, %s57
    %p59 = scmp.eq.s32.totalorder %s19, 0
    %p60 = por %p58, %p59
    %s61 = sadd.s32 %s20, %s21
    %s62 = sadd.s32 %s32, %s28
    %s63 = ssub.s32 %s61, %s62
    %p64 = scmp.eq.s32.totalorder %s63, 0
    %s66 = sadd.s32 %s65, 1
    %s67 = scalar_select %p64, %s65, %s66
    %p70 = pneg %p64
    %p71 = scmp.eq.s32.totalorder %s13, 1
    %p72 = por %p70, %p71
    %p73 = scmp.ne.s32.totalorder %s65, %s68
    %p74 = scmp.eq.s32.totalorder %s13, 0
    %p75 = por %p73, %p74
    %p76 = scmp.ne.s32.totalorder %s65, %s68
    %p77 = scmp.eq.s32.totalorder %s18, 1
    %p78 = por %p76, %p77
    %p79 = scmp.ne.s32.totalorder %s68, %s69
    %p80 = scmp.eq.s32.totalorder %s18, 0
    %p81 = por %p79, %p80
    %p82 = scmp.ne.s32.totalorder %s68, %s69
    %p83 = scmp.eq.s32.totalorder %s19, 1
    %p84 = por %p82, %p83
    %p86 = scmp.ne.s32.totalorder %s69, %s85
    %p87 = scmp.eq.s32.totalorder %s19, 0
    %p88 = por %p86, %p87
    %s89 = sadd.s32 %s20, %s21
    %s90 = sadd.s32 %s32, %s28
    %s91 = ssub.s32 %s89, %s90
    %p92 = scmp.eq.s32.totalorder %s91, 0
    %s94 = sadd.s32 %s93, 1
    %s95 = scalar_select %p92, %s93, %s94
    %p98 = pneg %p92
    %p99 = scmp.eq.s32.totalorder %s13, 1
    %p100 = por %p98, %p99
    %p101 = scmp.ne.s32.totalorder %s93, %s96
    %p102 = scmp.eq.s32.totalorder %s13, 0
    %p103 = por %p101, %p102
    %p104 = scmp.ne.s32.totalorder %s93, %s96
    %p105 = scmp.eq.s32.totalorder %s18, 1
    %p106 = por %p104, %p105
    %p107 = scmp.ne.s32.totalorder %s96, %s97
    %p108 = scmp.eq.s32.totalorder %s18, 0
    %p109 = por %p107, %p108
    %p110 = scmp.ne.s32.totalorder %s96, %s97
    %p111 = scmp.eq.s32.totalorder %s19, 1
    %p112 = por %p110, %p111
    %p114 = scmp.ne.s32.totalorder %s97, %s113
    %p115 = scmp.eq.s32.totalorder %s19, 0
    %p116 = por %p114, %p115
    %s118 = sadd.s32 %s117, 1
    %p121 = scmp.eq.s32.totalorder %s13, 1
    %p122 = scmp.ne.s32.totalorder %s117, %s119
    %p123 = scmp.eq.s32.totalorder %s13, 0
    %p124 = por %p122, %p123
    %p125 = scmp.ne.s32.totalorder %s117, %s119
    %p126 = scmp.eq.s32.totalorder %s18, 1
    %p127 = por %p125, %p126
    %p128 = scmp.ne.s32.totalorder %s119, %s120
    %p129 = scmp.eq.s32.totalorder %s18, 0
    %p130 = por %p128, %p129
    %p131 = scmp.ne.s32.totalorder %s119, %s120
    %p132 = scmp.eq.s32.totalorder %s19, 1
    %p133 = por %p131, %p132
    %p135 = scmp.ne.s32.totalorder %s120, %s134
    %p136 = scmp.eq.s32.totalorder %s19, 0
    %p137 = por %p135, %p136
    %s138 = sadd.s32 %s20, %s21
    %s139 = sadd.s32 %s32, %s28
    %s140 = ssub.s32 %s138, %s139
    %p141 = scmp.eq.s32.totalorder %s140, 0
    %s143 = sadd.s32 %s142, 1
    %s144 = scalar_select %p141, %s142, %s143
    %p147 = pneg %p141
    %p148 = scmp.eq.s32.totalorder %s13, 1
    %p149 = por %p147, %p148
    %p150 = scmp.ne.s32.totalorder %s142, %s145
    %p151 = scmp.eq.s32.totalorder %s13, 0
    %p152 = por %p150, %p151
    %p153 = scmp.ne.s32.totalorder %s142, %s145
    %p154 = scmp.eq.s32.totalorder %s18, 1
    %p155 = por %p153, %p154
    %p156 = scmp.ne.s32.totalorder %s145, %s146
    %p157 = scmp.eq.s32.totalorder %s18, 0
    %p158 = por %p156, %p157
    %p159 = scmp.ne.s32.totalorder %s145, %s146
    %p160 = scmp.eq.s32.totalorder %s19, 1
    %p161 = por %p159, %p160
    %p163 = scmp.ne.s32.totalorder %s146, %s162
    %p164 = scmp.eq.s32.totalorder %s19, 0
    %p165 = por %p163, %p164
    %s166 = ssub.s32 %s20, %s32
    %p167 = scmp.eq.s32.totalorder %s166, 0
    %s169 = sadd.s32 %s168, 1
    %s170 = scalar_select %p167, %s168, %s169
    %p173 = pneg %p167
    %p174 = scmp.eq.s32.totalorder %s13, 1
    %p175 = por %p173, %p174
    %p176 = scmp.ne.s32.totalorder %s168, %s171
    %p177 = scmp.eq.s32.totalorder %s13, 0
    %p178 = por %p176, %p177
    %p179 = scmp.ne.s32.totalorder %s168, %s171
    %p180 = scmp.eq.s32.totalorder %s18, 1
    %p181 = por %p179, %p180
    %p182 = scmp.ne.s32.totalorder %s171, %s172
    %p183 = scmp.eq.s32.totalorder %s18, 0
    %p184 = por %p182, %p183
    %p185 = scmp.ne.s32.totalorder %s171, %s172
    %p186 = scmp.eq.s32.totalorder %s19, 1
    %p187 = por %p185, %p186
    %p189 = scmp.ne.s32.totalorder %s172, %s188
    %p190 = scmp.eq.s32.totalorder %s19, 0
    %p191 = por %p189, %p190
    %s192 = ssub.s32 %s20, %s32
    %p193 = scmp.eq.s32.totalorder %s192, 0
    %s195 = sadd.s32 %s194, 1
    %s196 = scalar_select %p193, %s194, %s195
    %p199 = pneg %p193
    %p200 = scmp.eq.s32.totalorder %s13, 1
    %p201 = por %p199, %p200
    %p202 = scmp.ne.s32.totalorder %s194, %s197
    %p203 = scmp.eq.s32.totalorder %s13, 0
    %p204 = por %p202, %p203
    %p205 = scmp.ne.s32.totalorder %s194, %s197
    %p206 = scmp.eq.s32.totalorder %s18, 1
    %p207 = por %p205, %p206
    %p208 = scmp.ne.s32.totalorder %s197, %s198
    %p209 = scmp.eq.s32.totalorder %s18, 0
    %p210 = por %p208, %p209
    %p211 = scmp.ne.s32.totalorder %s197, %s198
    %p212 = scmp.eq.s32.totalorder %s19, 1
    %p213 = por %p211, %p212
    %p215 = scmp.ne.s32.totalorder %s198, %s214
    %p216 = scmp.eq.s32.totalorder %s19, 0
    %p217 = por %p215, %p216
    %p218 = scmp.le.s32.totalorder 1, %s13
    %p219 = scmp.lt.s32.totalorder %s13, 3
    %p220 = pnand %p218, %p219
    %p221 = pneg %p220
    // Predicated region
    $region9: #{tpu_custom_call.1} parent=5 // pred_check
      _
    $region10: #{tpu_custom_call.1} parent=5 // pred_check_branch
      %223 = sbr.rel (%p220) target = $region12
    $region11: #{tpu_custom_call.1} parent=5 // pred_region
      %s224 = ssub.s32 %s13, 1
      // Predicated region
      $region13: #{tpu_custom_call.1} parent=11 // pred_check
        %p225 = pneg %p130
      $region14: #{tpu_custom_call.1} parent=11 // pred_check_branch
        %227 = sbr.rel (%p225) target = $region16
      $region15: #{tpu_custom_call.1} parent=11 // pred_region
        _
      $region16: #{tpu_custom_call.1} parent=11 // pred_fallthru
        _
    $region12: #{tpu_custom_call.1} parent=5 // pred_fallthru
      _
    %p228 = scmp.lt.s32.totalorder %s13, 2
    // Predicated region
    $region17: #{tpu_custom_call.1} parent=5 // pred_check
      %p229 = pneg %p228
    $region18: #{tpu_custom_call.1} parent=5 // pred_check_branch
      %231 = sbr.rel (%p229) target = $region20
    $region19: #{tpu_custom_call.1} parent=5 // pred_region
      // Predicated region
      $region21: #{tpu_custom_call.1} parent=19 // pred_check
        %p232 = pneg %p47
      $region22: #{tpu_custom_call.1} parent=19 // pred_check_branch
        %234 = sbr.rel (%p232) target = $region24
      $region23: #{tpu_custom_call.1} parent=19 // pred_region
        %s235 = sadd.s32 %s20, %s21
        %p236 = scmp.lt.s32.totalorder %s235, 1
        %s237 = scalar_select %p236, %s235, 1
        %s238 = smul.addr %s237, 8
        %s239 = scalar_lea.vmem %s0, %s238
        %s240 = sadd.s32 %s20, %s21
      $region24: #{tpu_custom_call.1} parent=19 // pred_fallthru
        _
      // Predicated region
      $region25: #{tpu_custom_call.1} parent=19 // pred_check
        %p241 = pneg %p75
      $region26: #{tpu_custom_call.1} parent=19 // pred_check_branch
        %243 = sbr.rel (%p241) target = $region28
      $region27: #{tpu_custom_call.1} parent=19 // pred_region
        %s244 = sadd.s32 %s20, %s21
        %p245 = scmp.lt.s32.totalorder %s244, 1
        %s246 = scalar_select %p245, %s244, 1
        %s247 = smul.addr %s246, 8
        %s248 = scalar_lea.vmem %s1, %s247
        %s249 = sadd.s32 %s20, %s21
      $region28: #{tpu_custom_call.1} parent=19 // pred_fallthru
        _
      // Predicated region
      $region29: #{tpu_custom_call.1} parent=19 // pred_check
        %p250 = pneg %p103
      $region30: #{tpu_custom_call.1} parent=19 // pred_check_branch
        %252 = sbr.rel (%p250) target = $region32
      $region31: #{tpu_custom_call.1} parent=19 // pred_region
        %s253 = sadd.s32 %s20, %s21
        %p254 = scmp.lt.s32.totalorder %s253, 1
        %s255 = scalar_select %p254, %s253, 1
        %s256 = smul.addr %s255, 8
        %s257 = scalar_lea.vmem %s2, %s256
        %s258 = sadd.s32 %s20, %s21
      $region32: #{tpu_custom_call.1} parent=19 // pred_fallthru
        _
    $region20: #{tpu_custom_call.1} parent=5 // pred_fallthru
      _
    %p259 = scmp.le.s32.totalorder 1, %s13
    %p260 = scmp.lt.s32.totalorder %s13, 3
    %p261 = pnand %p259, %p260
    %p262 = pneg %p261
    // Predicated region
    $region33: #{tpu_custom_call.1} parent=5 // pred_check
      _
    $region34: #{tpu_custom_call.1} parent=5 // pred_check_branch
      %264 = sbr.rel (%p261) target = $region36
    $region35: #{tpu_custom_call.1} parent=5 // pred_region
      %s265 = ssub.s32 %s13, 1
      %s266 = sadd.s32 %s22, %s23
      %p267 = scmp.lt.s32.totalorder %s266, 1
      %s268 = scalar_select %p267, %s266, 1
      %s269 = smul.addr %s268, 8
      %s270 = scalar_lea.vmem %s0, %s269
      %p271 = pneg %p53
      %p272 = pneg %p50
      %s273 = sadd.s32 %s22, %s23
      %p274 = scmp.lt.s32.totalorder %s273, 1
      %s275 = scalar_select %p274, %s273, 1
      %s276 = smul.addr %s275, 8
      %s277 = scalar_lea.vmem %s1, %s276
      %p278 = pneg %p81
      %p279 = pneg %p78
      %s280 = sadd.s32 %s22, %s23
      %p281 = scmp.lt.s32.totalorder %s280, 1
      %s282 = scalar_select %p281, %s280, 1
      %s283 = smul.addr %s282, 8
      %s284 = scalar_lea.vmem %s2, %s283
      %p285 = pneg %p109
      %p286 = pneg %p106
      %p287 = pneg %p130
      %p288 = pneg %p127
      %p289 = pneg %p158
      %p290 = pneg %p155
      %s291 = sadd.s32 %s22, %s23
      %p292 = scmp.lt.s32.totalorder %s291, 1
      %s293 = scalar_select %p292, %s291, 1
      %s294 = smul.addr %s293, 8
      %s295 = scalar_lea.vmem %s4, %s294
      %p296 = pneg %p184
      %p297 = pneg %p181
      %p298 = scmp.lt.s32.totalorder %s22, 1
      %s299 = scalar_select %p298, %s22, 1
      %s300 = smul.addr %s299, 8
      %s301 = scalar_lea.vmem %s5, %s300
      %p302 = pneg %p210
      %p303 = pneg %p207
      %p304 = scmp.lt.s32.totalorder %s22, 1
      %s305 = scalar_select %p304, %s22, 1
      %s306 = smul.addr %s305, 8
      %s307 = scalar_lea.vmem %s6, %s306
      %s308 = sadd.s32 %s22, %s23
      %p309 = scmp.lt.s32.totalorder %s308, 1
      %s310 = scalar_select %p309, %s308, 1
      %s311 = smul.addr %s310, 8
      %s312 = scalar_lea.vmem %s0, %s311
      %s313 = sadd.s32 %s22, %s23
      %s314 = sadd.s32 %s22, %s23
      %p315 = scmp.lt.s32.totalorder %s314, 1
      %s316 = scalar_select %p315, %s314, 1
      %s317 = smul.addr %s316, 8
      %s318 = scalar_lea.vmem %s1, %s317
      %s319 = sadd.s32 %s22, %s23
      %s320 = sadd.s32 %s22, %s23
      %p321 = scmp.lt.s32.totalorder %s320, 1
      %s322 = scalar_select %p321, %s320, 1
      %s323 = smul.addr %s322, 8
      %s324 = scalar_lea.vmem %s2, %s323
      %s325 = sadd.s32 %s22, %s23
      %s326 = sadd.s32 %s22, %s23
      %p327 = scmp.lt.s32.totalorder %s326, 1
      %s328 = scalar_select %p327, %s326, 1
      %s329 = smul.addr %s328, 8
      %s330 = scalar_lea.vmem %s4, %s329
      %s331 = sadd.s32 %s22, %s23
      %p332 = scmp.lt.s32.totalorder %s22, 1
      %s333 = scalar_select %p332, %s22, 1
      %s334 = smul.addr %s333, 8
      %s335 = scalar_lea.vmem %s5, %s334
      %p336 = scmp.lt.s32.totalorder %s22, 1
      %s337 = scalar_select %p336, %s22, 1
      %s338 = smul.addr %s337, 8
      %s339 = scalar_lea.vmem %s6, %s338
      %p340 = scmp.eq.s32.totalorder %s23, 0
      // Predicated region
      $region37: #{tpu_custom_call.1} parent=35 // pred_check
        %p341 = pneg %p340
      $region38: #{tpu_custom_call.1} parent=35 // pred_check_branch
        %343 = sbr.rel (%p341) target = $region40
      $region39: #{tpu_custom_call.1} parent=35 // pred_region
        %vm344 = vcmask 64512
        %345 = vst.msk [vmem:[%s335] sm:$0xff] %vm344, -1e+30
        %346 = vst.msk [vmem:[%s339] sm:$0xff] %vm344, 0.0
      $region40: #{tpu_custom_call.1} parent=35 // pred_fallthru
        _
      %v347 = vld [vmem:[%s312] sm:$0xff]
      %v348 = vlaneseq
      %v349 = vand.u32 %v348, 127
      %350 = vset.pattern.permute.xlu0 0
      %351 = vperm.xlu0 %350, %v347
      %v352 = vpop.permute.xlu0 %351
      %vm353 = vcmp.eq.s32.totalorder %v352, %v349
      %v354 = vsel %vm353, 1, 0
      %v355 = vcvt.s32.f32 %v354
      %v356 = vld [vmem:[%s318] sm:$0xff]
      %v357 = vld [vmem:[%s3] sm:$0xff]
      %v358 = vld [vmem:[%s3 + $0x8] sm:$0xff]
      %v359 = vld [vmem:[%s3 + $0x10] sm:$0xff]
      %v360 = vld [vmem:[%s3 + $0x18] sm:$0xff]
      %v361 = vld [vmem:[%s324] sm:$0xff]
      %vm362 = vcmask 261120
      %v364 = vsel %vm362, %v356, 0
      %366 = vmatpush.msra.mxu0 0.0
      %367 = vmatpush.msra.mxu0 0.0
      %368 = vmatpush.msra.mxu0 0.0
      %369 = vmatpush.msra.mxu0 0.0
      %370 = vmatpush.msra.mxu0 0.0
      %371 = vmatpush.msra.mxu0 0.0
      %372 = vmatpush.msra.mxu0 0.0
      %373 = vmatpush.msra.mxu0 0.0
      %374 = vmatpush.msra.mxu0 0.0
      %375 = vmatpush.msra.mxu0 0.0
      %376 = vmatpush.msra.mxu0 0.0
      %377 = vmatpush.msra.mxu0 0.0
      %378 = vmatpush.msra.mxu0 %v360
      %379 = vmatpush.msra.mxu0 %v359
      %380 = vmatpush.msra.mxu0 %v358
      %381 = vmatpush.msra.mxu0 %v357
      %382 = vmatmul.f32.gmra.mxu0 %v364
      %v383 = vpop.f32.mrf.mxu0
      %v384 = vadd.f32 %v361, %v383
      %385 = vdwg.mxu0
      %vm386 = vcmp.ge.f32.partialorder %v384, 0.0
      %v387 = vmul.f32 %v384, 0.1
      %v388 = vsel %vm386, %v384, %v387
      %vm389 = vcmask 64512
      %390 = vst.msk [vmem:[%s330] sm:$0xff] %vm389, %v388
      %392 = vset.pattern.permute.xlu0 0
      %393 = vperm.xlu0 %392, %v388
      %v394 = vpop.permute.xlu0 %393
      %v396 = vsel %vm353, %v394, -1e+30
      %v397 = vsel %vm389, %v396, -inf
      %v398 = vrot.slane %v397, 4
      %v399 = vmax.f32 %v397, %v398
      %v400 = vrot.slane %v399, 2
      %v401 = vmax.f32 %v399, %v400
      %v402 = vrot.slane %v401, 1
      %v403 = vmax.f32 %v401, %v402
      %404 = vset.pattern.permute.xlu0 1
      %405 = vperm.xlu0 %404, %v388
      %v406 = vpop.permute.xlu0 %405
      %v408 = vsel %vm353, %v406, -1e+30
      %v409 = vsel %vm389, %v408, -inf
      %v410 = vrot.slane %v409, 4
      %v411 = vmax.f32 %v409, %v410
      %v412 = vrot.slane %v411, 2
      %v413 = vmax.f32 %v411, %v412
      %v414 = vrot.slane %v413, 1
      %v415 = vmax.f32 %v413, %v414
      %416 = vset.pattern.permute.xlu0 2
      %417 = vperm.xlu0 %416, %v388
      %v418 = vpop.permute.xlu0 %417
      %v420 = vsel %vm353, %v418, -1e+30
      %v421 = vsel %vm389, %v420, -inf
      %v422 = vrot.slane %v421, 4
      %v423 = vmax.f32 %v421, %v422
      %v424 = vrot.slane %v423, 2
      %v425 = vmax.f32 %v423, %v424
      %v426 = vrot.slane %v425, 1
      %v427 = vmax.f32 %v425, %v426
      %428 = vset.pattern.permute.xlu0 3
      %429 = vperm.xlu0 %428, %v388
      %v430 = vpop.permute.xlu0 %429
      %v432 = vsel %vm353, %v430, -1e+30
      %v433 = vsel %vm389, %v432, -inf
      %v434 = vrot.slane %v433, 4
      %v435 = vmax.f32 %v433, %v434
      %v436 = vrot.slane %v435, 2
      %v437 = vmax.f32 %v435, %v436
      %v438 = vrot.slane %v437, 1
      %v439 = vmax.f32 %v437, %v438
      %440 = vset.pattern.permute.xlu0 4
      %441 = vperm.xlu0 %440, %v388
      %v442 = vpop.permute.xlu0 %441
      %v444 = vsel %vm353, %v442, -1e+30
      %v445 = vsel %vm389, %v444, -inf
      %v446 = vrot.slane %v445, 4
      %v447 = vmax.f32 %v445, %v446
      %v448 = vrot.slane %v447, 2
      %v449 = vmax.f32 %v447, %v448
      %v450 = vrot.slane %v449, 1
      %v451 = vmax.f32 %v449, %v450
      %452 = vset.pattern.permute.xlu0 5
      %453 = vperm.xlu0 %452, %v388
      %v454 = vpop.permute.xlu0 %453
      %v456 = vsel %vm353, %v454, -1e+30
      %v457 = vsel %vm389, %v456, -inf
      %v458 = vrot.slane %v457, 4
      %v459 = vmax.f32 %v457, %v458
      %v460 = vrot.slane %v459, 2
      %v461 = vmax.f32 %v459, %v460
      %v462 = vrot.slane %v461, 1
      %v463 = vmax.f32 %v461, %v462
      %464 = vset.pattern.permute.xlu0 6
      %465 = vperm.xlu0 %464, %v388
      %v466 = vpop.permute.xlu0 %465
      %v468 = vsel %vm353, %v466, -1e+30
      %v469 = vsel %vm389, %v468, -inf
      %v470 = vrot.slane %v469, 4
      %v471 = vmax.f32 %v469, %v470
      %v472 = vrot.slane %v471, 2
      %v473 = vmax.f32 %v471, %v472
      %v474 = vrot.slane %v473, 1
      %v475 = vmax.f32 %v473, %v474
      %476 = vset.pattern.permute.xlu0 7
      %477 = vperm.xlu0 %476, %v388
      %v478 = vpop.permute.xlu0 %477
      %v480 = vsel %vm353, %v478, -1e+30
      %v481 = vsel %vm389, %v480, -inf
      %v482 = vrot.slane %v481, 4
      %v483 = vmax.f32 %v481, %v482
      %v484 = vrot.slane %v483, 2
      %v485 = vmax.f32 %v483, %v484
      %v486 = vrot.slane %v485, 1
      %v487 = vmax.f32 %v485, %v486
      %vm488 = vcmask 1040384
      %v489 = vsel %vm488, %v403, %v415
      %vm490 = vcmask 1041408
      %v491 = vsel %vm490, %v489, %v427
      %vm492 = vcmask 1042432
      %v493 = vsel %vm492, %v491, %v439
      %vm494 = vcmask 1043456
      %v495 = vsel %vm494, %v493, %v451
      %vm496 = vcmask 1044480
      %v497 = vsel %vm496, %v495, %v463
      %vm498 = vcmask 1045504
      %v499 = vsel %vm498, %v497, %v475
      %vm500 = vcmask 1046528
      %v501 = vsel %vm500, %v499, %v487
      %v502 = vld [vmem:[%s335] sm:$0xff]
      %v503 = vmax.f32 %v502, %v501
      %v504 = vsub.f32 %v502, %v503
      %v505 = vmul.f32 %v504, 1.442695
      %v506 = vpow.pop %v505
      %v508 = vsel %vm389, %v355, 0
      %v511 = vsel %vm389, %v503, 0
      %513 = vmatpush.xpose.msra.mxu0 0.0
      %514 = vmatpush.xpose.msra.mxu0 0.0
      %515 = vmatpush.xpose.msra.mxu0 0.0
      %516 = vmatpush.xpose.msra.mxu0 0.0
      %517 = vmatpush.xpose.msra.mxu0 0.0
      %518 = vmatpush.xpose.msra.mxu0 0.0
      %519 = vmatpush.xpose.msra.mxu0 0.0
      %520 = vmatpush.xpose.msra.mxu0 0.0
      %521 = vmatpush.xpose.msra.mxu0 0.0
      %522 = vmatpush.xpose.msra.mxu0 0.0
      %523 = vmatpush.xpose.msra.mxu0 0.0
      %524 = vmatpush.xpose.msra.mxu0 0.0
      %525 = vmatpush.xpose.msra.mxu0 0.0
      %526 = vmatpush.xpose.msra.mxu0 0.0
      %527 = vmatpush.xpose.msra.mxu0 0.0
      %528 = vmatpush.xpose.msra.mxu0 %v511
      %529 = vmatmul.f32.gmra.mxu0 %v508
      %v530 = vpop.f32.mrf.mxu0
      %v531 = vadd.f32 0.0, %v530
      %532 = vdwg.mxu0
      %v533 = vsub.f32 %v388, %v531
      %v534 = vmul.f32 %v533, 1.442695
      %v535 = vpow.pop %v534
      %536 = vxpose.xlu0.b32.start [1/16] %v535, 128
      %537 = vxpose.xlu0.b32.cont [2/16] 0.0, 128
      %538 = vxpose.xlu0.b32.cont [3/16] 0.0, 128
      %539 = vxpose.xlu0.b32.cont [4/16] 0.0, 128
      %540 = vxpose.xlu0.b32.cont [5/16] 0.0, 128
      %541 = vxpose.xlu0.b32.cont [6/16] 0.0, 128
      %542 = vxpose.xlu0.b32.cont [7/16] 0.0, 128
      %543 = vxpose.xlu0.b32.cont [8/16] 0.0, 128
      %544 = vxpose.xlu0.b32.cont [9/16] 0.0, 128
      %545 = vxpose.xlu0.b32.cont [10/16] 0.0, 128
      %546 = vxpose.xlu0.b32.cont [11/16] 0.0, 128
      %547 = vxpose.xlu0.b32.cont [12/16] 0.0, 128
      %548 = vxpose.xlu0.b32.cont [13/16] 0.0, 128
      %549 = vxpose.xlu0.b32.cont [14/16] 0.0, 128
      %550 = vxpose.xlu0.b32.cont [15/16] 0.0, 128
      %551 = vxpose.xlu0.b32.end [16/16] 0.0, 128
      %v552 = vpop.trf.xlu0
      %v553 = vpop.trf.xlu0
      %v554 = vpop.trf.xlu0
      %v555 = vpop.trf.xlu0
      %v556 = vpop.trf.xlu0
      %v557 = vpop.trf.xlu0
      %v558 = vpop.trf.xlu0
      %v559 = vpop.trf.xlu0
      %v560 = vpop.trf.xlu0
      %v561 = vpop.trf.xlu0
      %v562 = vpop.trf.xlu0
      %v563 = vpop.trf.xlu0
      %v564 = vpop.trf.xlu0
      %v565 = vpop.trf.xlu0
      %v566 = vpop.trf.xlu0
      %v567 = vpop.trf.xlu0
      %v569 = vsel %vm389, %v552, 0
      %571 = vmatpush.msra.mxu0 0.0
      %572 = vmatpush.msra.mxu0 0.0
      %573 = vmatpush.msra.mxu0 0.0
      %574 = vmatpush.msra.mxu0 0.0
      %575 = vmatpush.msra.mxu0 0.0
      %576 = vmatpush.msra.mxu0 0.0
      %577 = vmatpush.msra.mxu0 0.0
      %578 = vmatpush.msra.mxu0 0.0
      %579 = vmatpush.msra.mxu0 0.0
      %580 = vmatpush.msra.mxu0 0.0
      %581 = vmatpush.msra.mxu0 0.0
      %582 = vmatpush.msra.mxu0 0.0
      %583 = vmatpush.msra.mxu0 0.0
      %584 = vmatpush.msra.mxu0 0.0
      %585 = vmatpush.msra.mxu0 0.0
      %586 = vmatpush.msra.mxu0 %v355
      %587 = vmatmul.f32.gmra.mxu0 %v569
      %v588 = vpop.f32.mrf.mxu0
      %v589 = vadd.f32 0.0, %v588
      %590 = vdwg.mxu0
      %v591 = vld [vmem:[%s339] sm:$0xff]
      %v592 = vmul.f32 %v506, %v591
      %v593 = vadd.f32 %v592, %v589
      %594 = vst.msk [vmem:[%s339] sm:$0xff] %vm389, %v593
      %595 = vst.msk [vmem:[%s335] sm:$0xff] %vm389, %v503
      %s596 = sadd.s32 %s22, %s23
      %p597 = scmp.lt.s32.totalorder %s596, 1
      %s598 = scalar_select %p597, %s596, 1
      %s599 = smul.addr %s598, 8
      %s600 = scalar_lea.vmem %s4, %s599
      %p601 = scmp.lt.s32.totalorder %s22, 1
      %s602 = scalar_select %p601, %s22, 1
      %s603 = smul.addr %s602, 8
      %s604 = scalar_lea.vmem %s5, %s603
      %p605 = scmp.lt.s32.totalorder %s22, 1
      %s606 = scalar_select %p605, %s22, 1
      %s607 = smul.addr %s606, 8
      %s608 = scalar_lea.vmem %s6, %s607
      // Predicated region
      $region41: #{tpu_custom_call.1} parent=35 // pred_check
        %p609 = pneg %p155
      $region42: #{tpu_custom_call.1} parent=35 // pred_check_branch
        %611 = sbr.rel (%p609) target = $region44
      $region43: #{tpu_custom_call.1} parent=35 // pred_region
        %s612 = sadd.s32 %s22, %s23
      $region44: #{tpu_custom_call.1} parent=35 // pred_fallthru
        _
      // Predicated region
      $region45: #{tpu_custom_call.1} parent=35 // pred_check
        %p613 = pneg %p181
      $region46: #{tpu_custom_call.1} parent=35 // pred_check_branch
        %615 = sbr.rel (%p613) target = $region48
      $region47: #{tpu_custom_call.1} parent=35 // pred_region
        _
      $region48: #{tpu_custom_call.1} parent=35 // pred_fallthru
        _
      // Predicated region
      $region49: #{tpu_custom_call.1} parent=35 // pred_check
        %p616 = pneg %p207
      $region50: #{tpu_custom_call.1} parent=35 // pred_check_branch
        %618 = sbr.rel (%p616) target = $region52
      $region51: #{tpu_custom_call.1} parent=35 // pred_region
        _
      $region52: #{tpu_custom_call.1} parent=35 // pred_fallthru
        _
    $region36: #{tpu_custom_call.1} parent=5 // pred_fallthru
      _
    %p619 = scmp.le.s32.totalorder 2, %s13
    // Predicated region
    $region53: #{tpu_custom_call.1} parent=5 // pred_check
      %p620 = pneg %p619
    $region54: #{tpu_custom_call.1} parent=5 // pred_check_branch
      %622 = sbr.rel (%p620) target = $region56
    $region55: #{tpu_custom_call.1} parent=5 // pred_region
      %s623 = ssub.s32 %s13, 2
      // Predicated region
      $region57: #{tpu_custom_call.1} parent=55 // pred_check
        %p624 = pneg %p161
      $region58: #{tpu_custom_call.1} parent=55 // pred_check_branch
        %626 = sbr.rel (%p624) target = $region60
      $region59: #{tpu_custom_call.1} parent=55 // pred_region
        %s627 = sadd.s32 %s24, %s25
        %p628 = scmp.lt.s32.totalorder %s627, 1
        %s629 = scalar_select %p628, %s627, 1
        %s630 = smul.addr %s629, 8
        %s631 = scalar_lea.vmem %s4, %s630
      $region60: #{tpu_custom_call.1} parent=55 // pred_fallthru
        _
      // Predicated region
      $region61: #{tpu_custom_call.1} parent=55 // pred_check
        %p632 = pneg %p187
      $region62: #{tpu_custom_call.1} parent=55 // pred_check_branch
        %634 = sbr.rel (%p632) target = $region64
      $region63: #{tpu_custom_call.1} parent=55 // pred_region
        %p635 = scmp.lt.s32.totalorder %s24, 1
        %s636 = scalar_select %p635, %s24, 1
        %s637 = smul.addr %s636, 8
        %s638 = scalar_lea.vmem %s5, %s637
      $region64: #{tpu_custom_call.1} parent=55 // pred_fallthru
        _
      // Predicated region
      $region65: #{tpu_custom_call.1} parent=55 // pred_check
        %p639 = pneg %p213
      $region66: #{tpu_custom_call.1} parent=55 // pred_check_branch
        %641 = sbr.rel (%p639) target = $region68
      $region67: #{tpu_custom_call.1} parent=55 // pred_region
        %p642 = scmp.lt.s32.totalorder %s24, 1
        %s643 = scalar_select %p642, %s24, 1
        %s644 = smul.addr %s643, 8
        %s645 = scalar_lea.vmem %s6, %s644
      $region68: #{tpu_custom_call.1} parent=55 // pred_fallthru
        _
    $region56: #{tpu_custom_call.1} parent=5 // pred_fallthru
      _
  $region6: #{tpu_custom_call.1} parent=0 // loop_footer
    %s17 = sadd.s32 1, %s13
  $region7: #{tpu_custom_call.1} parent=0 // loop_footer_branch
    %12 = sbr.rel target = $region3
  $region8: #{tpu_custom_call.1} parent=0 // loop_exit
    _

</llo_original>
